<compile_context>
chip_gen: v6e
topology: v6e:2x2x1
jax: 0.10.0
libtpu: 0.0.40
codegen_flags: <defaults>
</compile_context>

<pallas_src>
import functools

import jax
import jax.numpy as jnp
from jax import lax
from jax.experimental import pallas as pl
from jax.experimental.pallas import tpu as pltpu


def _heatmap_partial_kernel(rows, row_tile, p_ref, g_ref, m_ref, o_ref):
    # Compute in f32 regardless of input dtype.
    p = p_ref[...].astype(jnp.float32)
    g = g_ref[...].astype(jnp.float32)
    m = m_ref[...].astype(jnp.float32)
    d = p - g
    s = d * d * m

    # Mask out padded rows of the ragged last block (only emitted when needed).
    if rows % row_tile != 0:
        i = pl.program_id(0)
        row_ids = i * row_tile + lax.broadcasted_iota(jnp.int32, s.shape, 0)
        s = jnp.where(row_ids < rows, s, 0.0)

    partial = jnp.sum(s)
    # Lane-dense, tile-aligned output block; wrapper reads [:, 0, 0].
    o_ref[...] = jnp.full(o_ref.shape, partial, dtype=o_ref.dtype)


@jax.jit
def heatmap_loss(pred, gt, mask):
    """Pallas implementation of HeatmapLoss.forward. Returns a scalar f32."""
    assert pred.shape == gt.shape == mask.shape
    B, C, H, W = pred.shape
    rows = B * C
    cols = H * W

    # (B, C, H, W) -> (B*C, H*W); pure layout glue (contiguous), no compute.
    p2 = pred.reshape(rows, cols)
    g2 = gt.reshape(rows, cols)
    m2 = mask.reshape(rows, cols)

    # --- Tile sizing: big contiguous row stripes, sized to a VMEM budget ----
    bytes_per_row = cols * (
        p2.dtype.itemsize + g2.dtype.itemsize + m2.dtype.itemsize
    )
    # 3 inputs x 2 pipeline buffers must stay well under the scoped VMEM
    # limit on every generation (v5e default 16 MiB, v7x physical 64 MiB).
    vmem_budget = 24 * 1024 * 1024
    row_tile = (vmem_budget // (2 * bytes_per_row)) // 8 * 8
    row_tile = max(8, row_tile)
    if row_tile >= rows:
        row_tile = rows          # single full block (any row count allowed)
        grid_rows = 1
    else:
        grid_rows = -(-rows // row_tile)

    # Raise the scoped VMEM limit enough for the chosen blocks (+ headroom),
    # but never below 32 MiB (safe on v5e/v6e/v7x).
    block_bytes = 2 * row_tile * bytes_per_row
    vmem_limit = max(32 * 1024 * 1024, int(block_bytes * 1.25) + (1 << 20))

    in_spec = pl.BlockSpec((row_tile, cols), lambda i: (i, 0))

    partials = pl.pallas_call(
        functools.partial(_heatmap_partial_kernel, rows, row_tile),
        out_shape=jax.ShapeDtypeStruct((grid_rows, 8, 128), jnp.float32),
        grid_spec=pltpu.PrefetchScalarGridSpec(
            num_scalar_prefetch=0,
            grid=(grid_rows,),
            in_specs=[in_spec, in_spec, in_spec],
            out_specs=pl.BlockSpec((1, 8, 128), lambda i: (i, 0, 0)),
        ),
        compiler_params=pltpu.CompilerParams(
            dimension_semantics=("parallel",),
            vmem_limit_bytes=vmem_limit,
        ),
    )(p2, g2, m2)

    # Tiny final reduction + mean scale in the wrapper.
    total = jnp.sum(partials[:, 0, 0])
    return total * (1.0 / float(pred.size))


if __name__ == "__main__":
    key = jax.random.PRNGKey(0)
    kp, kg, km = jax.random.split(key, 3)

    B, C, H, W = 2, 4, 16, 16
    pred = jax.random.normal(kp, (B, C, H, W), dtype=jnp.float32)
    gt = jax.random.normal(kg, (B, C, H, W), dtype=jnp.float32)
    mask = (jax.random.uniform(km, (B, C, H, W)) > 0.3).astype(jnp.float32)

    loss = jax.block_until_ready(heatmap_loss(pred, gt, mask))

    # reference (pure JAX) — matches torch's sequential means over dims 3,2,1,0
    ref = jnp.mean((pred - gt) ** 2 * mask)
    assert jnp.allclose(loss, ref, rtol=1e-5, atol=1e-6), (loss, ref)

    # Also exercise a shape where H*W is not a multiple of 128 and rows are
    # ragged w.r.t. the row tile (covers the masked-tail path logic).
    B2, C2, H2, W2 = 3, 5, 17, 17
    p2 = jax.random.normal(kp, (B2, C2, H2, W2), dtype=jnp.float32)
    g2 = jax.random.normal(kg, (B2, C2, H2, W2), dtype=jnp.float32)
    m2 = (jax.random.uniform(km, (B2, C2, H2, W2)) > 0.5).astype(jnp.float32)
    loss2 = jax.block_until_ready(heatmap_loss(p2, g2, m2))
    ref2 = jnp.mean((p2 - g2) ** 2 * m2)
    assert jnp.allclose(loss2, ref2, rtol=1e-5, atol=1e-6), (loss2, ref2)

    print("KERNEL_OK")
</pallas_src>

<mosaic_0001>
module attributes {stable_mosaic.version = 11 : i64} {
  func.func @_heatmap_partial_kernel(%arg0: i32, %arg1: memref<8x256xf32, #tpu.memory_space<vmem>>, %arg2: memref<8x256xf32, #tpu.memory_space<vmem>>, %arg3: memref<8x256xf32, #tpu.memory_space<vmem>>, %arg4: memref<1x8x128xf32, #tpu.memory_space<vmem>>) attributes {dimension_semantics = [#tpu.dimension_semantics<parallel>], iteration_bounds = array<i64: 1>, scalar_prefetch = 0 : i64, scratch_operands = 0 : i64, tpu.core_type = #tpu.core_type<tc>, window_params = [{transform_indices = @transform_0, window_bounds = array<i64: 8, 256>}, {transform_indices = @transform_1, window_bounds = array<i64: 8, 256>}, {transform_indices = @transform_2, window_bounds = array<i64: 8, 256>}, {transform_indices = @transform_3, window_bounds = array<i64: 1, 8, 128>}]} {
    %c0 = arith.constant 0 : index
    %c0_0 = arith.constant 0 : index
    %0 = vector.load %arg1[%c0, %c0_0] : memref<8x256xf32, #tpu.memory_space<vmem>>, vector<8x256xf32>
    %c0_1 = arith.constant 0 : index
    %c0_2 = arith.constant 0 : index
    %1 = vector.load %arg2[%c0_1, %c0_2] : memref<8x256xf32, #tpu.memory_space<vmem>>, vector<8x256xf32>
    %c0_3 = arith.constant 0 : index
    %c0_4 = arith.constant 0 : index
    %2 = vector.load %arg3[%c0_3, %c0_4] : memref<8x256xf32, #tpu.memory_space<vmem>>, vector<8x256xf32>
    %3 = arith.subf %0, %1 : vector<8x256xf32>
    %4 = arith.mulf %3, %3 : vector<8x256xf32>
    %5 = arith.mulf %4, %2 : vector<8x256xf32>
    %6 = vector.shape_cast %5 : vector<8x256xf32> to vector<1x8x256xf32>
    %cst = arith.constant dense<0.000000e+00> : vector<1xf32>
    %7 = vector.multi_reduction <add>, %6, %cst [1, 2] : vector<1x8x256xf32> to vector<1xf32>
    %8 = vector.shape_cast %7 : vector<1xf32> to vector<1x1x1xf32>
    %9 = vector.extract %8[0, 0, 0] : f32 from vector<1x1x1xf32>
    %10 = vector.broadcast %9 : f32 to vector<1x8x128xf32>
    %c0_5 = arith.constant 0 : index
    %c0_6 = arith.constant 0 : index
    %c0_7 = arith.constant 0 : index
    %11 = vector.load %arg4[%c0_5, %c0_6, %c0_7] : memref<1x8x128xf32, #tpu.memory_space<vmem>>, vector<1x8x128xf32>
    tpu.vector_store %arg4[%c0_5, %c0_6, %c0_7], %10 {strides = array<i32>} : memref<1x8x128xf32, #tpu.memory_space<vmem>>, vector<1x8x128xf32>,
    return
  }
  func.func @transform_0(%arg0: i32) -> (i32, i32) {
    %c0_i32 = arith.constant 0 : i32
    %c0_i32_0 = arith.constant 0 : i32
    return %arg0, %c0_i32 : i32, i32
  }
  func.func @transform_1(%arg0: i32) -> (i32, i32) {
    %c0_i32 = arith.constant 0 : i32
    %c0_i32_0 = arith.constant 0 : i32
    return %arg0, %c0_i32 : i32, i32
  }
  func.func @transform_2(%arg0: i32) -> (i32, i32) {
    %c0_i32 = arith.constant 0 : i32
    %c0_i32_0 = arith.constant 0 : i32
    return %arg0, %c0_i32 : i32, i32
  }
  func.func @transform_3(%arg0: i32) -> (i32, i32, i32) {
    %c0_i32 = arith.constant 0 : i32
    %c0_i32_0 = arith.constant 0 : i32
    %c0_i32_1 = arith.constant 0 : i32
    return %arg0, %c0_i32, %c0_i32_0 : i32, i32, i32
  }
}

</mosaic_0001>

<llo_original>
// kernel: heatmap_loss.1
$region0: #{heatmap_loss.1}
  #allocation0 [shape = 'u32[]', space=smem, size = 0x4, offset = 0x4, fixed_abs, tag = 'smem constant byte address 0x4 - core index']
  #allocation1 [shape = 'u32[144,128]{1,0:T(1,128)}', space=vmem, size = 0x12000, scoped, tag = 'internal scratch']
  %s0 = inlined_call_operand.vmem [shape: f32[8,256], index: 0, kind: input, shape index: {}]
  %s1 = inlined_call_operand.vmem [shape: f32[8,256], index: 1, kind: input, shape index: {}]
  %s2 = inlined_call_operand.vmem [shape: f32[8,256], index: 2, kind: input, shape index: {}]
  %s3 = inlined_call_operand.vmem [shape: f32[1,8,128], index: 3, kind: output, shape index: {}]
  %s4 = sld [smem:[#allocation0]]
  $region22: #{heatmap_loss.1} parent=0
    _
  %s6 = ssub.s32 1, %s4
  %s7 = scalar_select 0, %s6, %s4
  // Predicated region
  $region2: #{heatmap_loss.1} parent=0 // pred_check
    _
  $region3: #{heatmap_loss.1} parent=0 // pred_check_branch
    %9 = sbr.rel (0) target = $region5
  $region4: #{heatmap_loss.1} parent=0 // pred_region
    _
  $region5: #{heatmap_loss.1} parent=0 // pred_fallthru
    _
  // Predicated region
  $region6: #{heatmap_loss.1} parent=0 // pred_check
    _
  $region7: #{heatmap_loss.1} parent=0 // pred_check_branch
    %11 = sbr.rel (0) target = $region9
  $region8: #{heatmap_loss.1} parent=0 // pred_region
    _
  $region9: #{heatmap_loss.1} parent=0 // pred_fallthru
    _
  // Predicated region
  $region10: #{heatmap_loss.1} parent=0 // pred_check
    _
  $region11: #{heatmap_loss.1} parent=0 // pred_check_branch
    %13 = sbr.rel (0) target = $region13
  $region12: #{heatmap_loss.1} parent=0 // pred_region
    _
  $region13: #{heatmap_loss.1} parent=0 // pred_fallthru
    _
  %v14 = vld [vmem:[%s0] sm:$0xff]
  %v15 = vld [vmem:[%s0 + $0x8] sm:$0xff]
  %v16 = vld [vmem:[%s1] sm:$0xff]
  %v17 = vld [vmem:[%s1 + $0x8] sm:$0xff]
  %v18 = vld [vmem:[%s2] sm:$0xff]
  %v19 = vld [vmem:[%s2 + $0x8] sm:$0xff]
  %v20 = vsub.f32 %v14, %v16
  %v21 = vsub.f32 %v15, %v17
  %v22 = vmul.f32 %v20, %v20
  %v23 = vmul.f32 %v21, %v21
  %v24 = vmul.f32 %v22, %v18
  %v25 = vmul.f32 %v23, %v19
  %v26 = vadd.f32 %v24, %v25
  %27 = vadd.xlane.f32.xlu0 %v26
  %v28 = vpop.xlane.xlu0 %27
  %v29 = vrot.slane %v28, 4
  %v30 = vadd.f32 %v28, %v29
  %v31 = vrot.slane %v30, 2
  %v32 = vadd.f32 %v30, %v31
  %v33 = vrot.slane %v32, 1
  %v34 = vadd.f32 %v32, %v33
  %s35 = vtos %v34
  %v36 = vstv %s35
  %37 = vst [vmem:[%s3] sm:$0xff] %v36
  // Predicated region
  $region14: #{heatmap_loss.1} parent=0 // pred_check
    _
  $region15: #{heatmap_loss.1} parent=0 // pred_check_branch
    %39 = sbr.rel (0) target = $region17
  $region16: #{heatmap_loss.1} parent=0 // pred_region
    _
  $region17: #{heatmap_loss.1} parent=0 // pred_fallthru
    _
  // Predicated region
  $region18: #{heatmap_loss.1} parent=0 // pred_check
    _
  $region19: #{heatmap_loss.1} parent=0 // pred_check_branch
    %41 = sbr.rel (0) target = $region21
  $region20: #{heatmap_loss.1} parent=0 // pred_region
    _
  $region21: #{heatmap_loss.1} parent=0 // pred_fallthru
    _

</llo_original>
